<compile_context>
chip_gen: v5e
topology: v5e:2x2
jax: 0.10.0
libtpu: 0.0.40
codegen_flags: <defaults>
</compile_context>

<pallas_src>
import functools

import numpy as np
import jax
import jax.numpy as jnp
from jax.experimental import pallas as pl
from jax.experimental.pallas import tpu as pltpu


# ----------------------------------------------------------------------------
# Fused MSEF kernel: LayerNorm(C) + depthwise 3x3 + SE + residual.
# Block layout: x/o are (NB, C, HW); channels on sublanes, spatial on lanes.
# ----------------------------------------------------------------------------
def _msef_kernel(x_ref, mw_ref, pcol_ref, pse_ref, b1_ref, o_ref,
                 *, NB, C, W, HW, r, eps):
    # ---- unpack packed small parameters once per grid step -----------------
    pcol = pcol_ref[...]                     # (C, 4): gamma | beta | dw_b | fc2_b
    gamma = pcol[:, 0:1]
    beta = pcol[:, 1:2]
    dwb = pcol[:, 2:3]
    b2 = pcol[:, 3:4]
    pse = pse_ref[...]                       # (C, 2r): fc1_w^T | fc2_w
    w1t = pse[:, 0:r]                        # (C, r)
    w2 = pse[:, r:2 * r]                     # (C, r)
    b1 = b1_ref[...]                         # (1, r)
    inv_hw = jnp.float32(1.0 / HW)

    def image_body(i, carry):
        x = x_ref[i].astype(jnp.float32)                     # (C, HW)

        # ---- LayerNorm over the channel (sublane) axis, per pixel ----------
        mu = jnp.mean(x, axis=0, keepdims=True)              # (1, HW)
        xc = x - mu
        var = jnp.mean(xc * xc, axis=0, keepdims=True)       # (1, HW)
        xn = xc * jax.lax.rsqrt(var + eps)
        xn = xn * gamma + beta                               # (C, HW)
        # (x goes dead here; residual re-reads x_ref at the bottom)

        # ---- depthwise 3x3 (padding=1): lane rolls + precombined masked w --
        acc = jnp.zeros_like(xn)
        tap = 0
        for dy in (-1, 0, 1):
            for dx in (-1, 0, 1):
                s = dy * W + dx                              # flat-index offset
                if s == 0:
                    shifted = xn
                else:
                    # shifted[p] == xn[p + s]; wrapped lanes are zeroed because
                    # the corresponding masked weight is 0.
                    shifted = pltpu.roll(xn, shift=(-s) % HW, axis=1)
                acc = acc + shifted * mw_ref[tap]            # (C, HW) MAC per tap
                tap += 1
        x1 = acc + dwb                                       # (C, HW)

        # ---- SE block: avg pool -> fc1 -> relu -> fc2 -> sigmoid -----------
        m = jnp.sum(xn, axis=1, keepdims=True) * inv_hw                  # (C, 1)
        h1 = jnp.sum(w1t * m, axis=0, keepdims=True) + b1                # (1, r)
        h1 = jnp.maximum(h1, 0.0)
        h2 = jnp.sum(w2 * h1, axis=1, keepdims=True) + b2                # (C, 1)
        x2 = xn * jax.nn.sigmoid(h2)                                     # (C, HW)

        # ---- residual (re-read x to keep its live range short) -------------
        o_ref[i] = (x_ref[i].astype(jnp.float32) + x1 * x2).astype(o_ref.dtype)
        return carry

    jax.lax.fori_loop(0, NB, image_body, 0, unroll=True)


def _dw_boundary_masks(H, W):
    """(9, H*W) float32 masks: mask[tap, p]=1 iff the (dy,dx) tap at pixel p
    stays inside the image (zero padding of the depthwise conv)."""
    yy, xx = np.meshgrid(np.arange(H), np.arange(W), indexing="ij")
    yy = yy.reshape(-1)
    xx = xx.reshape(-1)
    m = np.zeros((9, H * W), np.float32)
    tap = 0
    for dy in (-1, 0, 1):
        for dx in (-1, 0, 1):
            valid = (yy + dy >= 0) & (yy + dy < H) & (xx + dx >= 0) & (xx + dx < W)
            m[tap] = valid.astype(np.float32)
            tap += 1
    return m


def _pick_nb(N, C, HW, itemsize, *, vmem_budget_bytes=24 << 20, nb_cap=64):
    """Images per grid step: big enough to amortize per-step overhead, small
    enough for the VMEM budget (v7x-safe), and keeping the grid length >= 2."""
    per_image = C * HW * itemsize
    cap = max(1, min(nb_cap, vmem_budget_bytes // (4 * per_image)))
    cap = max(1, min(cap, -(-N // 2)))        # grid length >= 2 when N >= 2
    nb = 1
    for d in range(1, min(N, cap) + 1):       # largest divisor of N <= cap
        if N % d == 0:
            nb = d
    return nb


def msef_forward(params, x_nchw, *, nb=None):
    N, C, H, W = x_nchw.shape
    HW = H * W
    r = params["fc1_w"].shape[0]
    itemsize = jnp.dtype(x_nchw.dtype).itemsize

    if nb is None:
        nb = _pick_nb(N, C, HW, itemsize)
    grid = N // nb

    x2d = x_nchw.reshape(N, C, HW)                       # free reshape (contiguous)

    # Pre-combine the zero-padding boundary masks with the depthwise weights:
    # mw[tap, c, p] = mask[tap, p] * dw_w[c, tap]   -> single MAC per tap in-kernel.
    masks = _dw_boundary_masks(H, W)                     # (9, HW) numpy
    dww_t = params["dw_w"].reshape(C, 9).T               # (9, C)
    mw = (jnp.asarray(masks)[:, None, :] * dww_t[:, :, None]).astype(jnp.float32)

    # Packed small parameters (cuts operand count from 10 to 5).
    pcol = jnp.stack([params["ln_gamma"], params["ln_beta"],
                      params["dw_b"], params["fc2_b"]], axis=1).astype(jnp.float32)   # (C, 4)
    pse = jnp.concatenate([params["fc1_w"].T, params["fc2_w"]],
                          axis=1).astype(jnp.float32)                                 # (C, 2r)
    b1 = params["fc1_b"].reshape(1, r).astype(jnp.float32)

    # Explicit VMEM limit: in+out blocks double-buffered + constant operands
    # (double-buffer-counted to be safe) + headroom; capped at 40 MiB for v7x.
    block_bytes = nb * C * HW * itemsize
    const_bytes = int(mw.size + pcol.size + pse.size + b1.size) * 4
    vmem_limit = int(min(max(4 * block_bytes + 2 * const_bytes + (4 << 20), 16 << 20),
                         40 << 20))

    out = pl.pallas_call(
        functools.partial(_msef_kernel, NB=nb, C=C, W=W, HW=HW, r=r, eps=1e-5),
        out_shape=jax.ShapeDtypeStruct((N, C, HW), x_nchw.dtype),
        grid=(grid,),
        in_specs=[
            pl.BlockSpec((nb, C, HW), lambda i: (i, 0, 0)),   # x (NB images)
            pl.BlockSpec((9, C, HW), lambda i: (0, 0, 0)),    # masked depthwise w
            pl.BlockSpec((C, 4), lambda i: (0, 0)),           # gamma|beta|dw_b|fc2_b
            pl.BlockSpec((C, 2 * r), lambda i: (0, 0)),       # fc1_w^T | fc2_w
            pl.BlockSpec((1, r), lambda i: (0, 0)),           # fc1_b
        ],
        out_specs=pl.BlockSpec((nb, C, HW), lambda i: (i, 0, 0)),
        compiler_params=pltpu.CompilerParams(
            dimension_semantics=("parallel",),
            vmem_limit_bytes=vmem_limit),
    )(x2d, mw, pcol, pse, b1)
    return out.reshape(N, C, H, W)


# ----------------------------------------------------------------------------
# Plain-JAX reference (mirrors the PyTorch module) for numerical validation.
# ----------------------------------------------------------------------------
def msef_reference(params, x):
    N, C, H, W = x.shape
    hp = jax.lax.Precision.HIGHEST
    # LayerNormalization (over channels, per pixel)
    xt = jnp.transpose(x, (0, 2, 3, 1))
    mu = jnp.mean(xt, axis=-1, keepdims=True)
    var = jnp.mean((xt - mu) ** 2, axis=-1, keepdims=True)
    xn = (xt - mu) / jnp.sqrt(var + 1e-5) * params["ln_gamma"] + params["ln_beta"]
    xn = jnp.transpose(xn, (0, 3, 1, 2))                 # (N,C,H,W)
    # depthwise 3x3 conv
    x1 = jax.lax.conv_general_dilated(
        xn, params["dw_w"], window_strides=(1, 1), padding=((1, 1), (1, 1)),
        dimension_numbers=("NCHW", "OIHW", "NCHW"),
        feature_group_count=C, precision=hp)
    x1 = x1 + params["dw_b"][None, :, None, None]
    # SE block
    m = jnp.mean(xn, axis=(2, 3))                                         # (N,C)
    h = jnp.maximum(
        jnp.einsum("nc,rc->nr", m, params["fc1_w"], precision=hp)
        + params["fc1_b"], 0.0)
    s = jax.nn.sigmoid(
        jnp.einsum("nr,cr->nc", h, params["fc2_w"], precision=hp)
        + params["fc2_b"])
    x2 = xn * s[:, :, None, None]
    return x + x1 * x2


# ----------------------------------------------------------------------------
# Deterministic parameter init (PyTorch-style fan-in uniform bounds)
# ----------------------------------------------------------------------------
def init_params(key, C, reduction=16):
    r = max(C // reduction, 1)
    ks = jax.random.split(key, 8)
    dw_bound = 1.0 / np.sqrt(9.0)         # depthwise fan-in = 1 * 3 * 3
    fc1_bound = 1.0 / np.sqrt(C)
    fc2_bound = 1.0 / np.sqrt(r)
    return {
        "ln_gamma": 1.0 + 0.1 * jax.random.normal(ks[0], (C,), jnp.float32),
        "ln_beta": 0.1 * jax.random.normal(ks[1], (C,), jnp.float32),
        "dw_w": jax.random.uniform(ks[2], (C, 1, 3, 3), jnp.float32, -dw_bound, dw_bound),
        "dw_b": jax.random.uniform(ks[3], (C,), jnp.float32, -dw_bound, dw_bound),
        "fc1_w": jax.random.uniform(ks[4], (r, C), jnp.float32, -fc1_bound, fc1_bound),
        "fc1_b": jax.random.uniform(ks[5], (r,), jnp.float32, -fc1_bound, fc1_bound),
        "fc2_w": jax.random.uniform(ks[6], (C, r), jnp.float32, -fc2_bound, fc2_bound),
        "fc2_b": jax.random.uniform(ks[7], (C,), jnp.float32, -fc2_bound, fc2_bound),
    }


if __name__ == "__main__":
    key = jax.random.PRNGKey(0)
    kx, kp = jax.random.split(key)
    N, C, H, W = 2, 32, 16, 16          # filters=32 so SE hidden = 32//16 = 2
    x = jax.random.normal(kx, (N, C, H, W), jnp.float32)
    params = init_params(kp, C)

    y = jax.block_until_ready(jax.jit(msef_forward)(params, x))
    y_ref = jax.block_until_ready(jax.jit(msef_reference)(params, x))

    assert y.shape == (N, C, H, W)
    assert bool(jnp.all(jnp.isfinite(y)))
    max_err = float(jnp.max(jnp.abs(y - y_ref)))
    assert max_err < 1e-3, f"mismatch vs reference: max abs err = {max_err}"
    print("KERNEL_OK")
</pallas_src>

<mosaic_0001>
module attributes {stable_mosaic.version = 11 : i64} {
  func.func @_msef_kernel(%arg0: i32, %arg1: memref<1x32x256xf32, #tpu.memory_space<vmem>>, %arg2: memref<9x32x256xf32, #tpu.memory_space<vmem>>, %arg3: memref<32x4xf32, #tpu.memory_space<vmem>>, %arg4: memref<32x4xf32, #tpu.memory_space<vmem>>, %arg5: memref<1x2xf32, #tpu.memory_space<vmem>>, %arg6: memref<1x32x256xf32, #tpu.memory_space<vmem>>) attributes {dimension_semantics = [#tpu.dimension_semantics<parallel>], iteration_bounds = array<i64: 2>, scalar_prefetch = 0 : i64, scratch_operands = 0 : i64, tpu.core_type = #tpu.core_type<tc>, window_params = [{transform_indices = @transform_0, window_bounds = array<i64: 1, 32, 256>}, {pipeline_mode = #tpu.pipeline_mode<synchronous>, transform_indices = @transform_1, window_bounds = array<i64: 9, 32, 256>}, {pipeline_mode = #tpu.pipeline_mode<synchronous>, transform_indices = @transform_2, window_bounds = array<i64: 32, 4>}, {pipeline_mode = #tpu.pipeline_mode<synchronous>, transform_indices = @transform_3, window_bounds = array<i64: 32, 4>}, {pipeline_mode = #tpu.pipeline_mode<synchronous>, transform_indices = @transform_4, window_bounds = array<i64: 1, 2>}, {transform_indices = @transform_5, window_bounds = array<i64: 1, 32, 256>}]} {
    %c0 = arith.constant 0 : index
    %c0_0 = arith.constant 0 : index
    %0 = vector.load %arg3[%c0, %c0_0] : memref<32x4xf32, #tpu.memory_space<vmem>>, vector<32x4xf32>
    %1 = vector.extract_strided_slice %0 {offsets = [0, 0], sizes = [32, 1], strides = [1, 1]} : vector<32x4xf32> to vector<32x1xf32>
    %2 = vector.extract_strided_slice %0 {offsets = [0, 1], sizes = [32, 1], strides = [1, 1]} : vector<32x4xf32> to vector<32x1xf32>
    %3 = vector.extract_strided_slice %0 {offsets = [0, 2], sizes = [32, 1], strides = [1, 1]} : vector<32x4xf32> to vector<32x1xf32>
    %4 = vector.extract_strided_slice %0 {offsets = [0, 3], sizes = [32, 1], strides = [1, 1]} : vector<32x4xf32> to vector<32x1xf32>
    %c0_1 = arith.constant 0 : index
    %c0_2 = arith.constant 0 : index
    %5 = vector.load %arg4[%c0_1, %c0_2] : memref<32x4xf32, #tpu.memory_space<vmem>>, vector<32x4xf32>
    %6 = vector.extract_strided_slice %5 {offsets = [0, 0], sizes = [32, 2], strides = [1, 1]} : vector<32x4xf32> to vector<32x2xf32>
    %7 = vector.extract_strided_slice %5 {offsets = [0, 2], sizes = [32, 2], strides = [1, 1]} : vector<32x4xf32> to vector<32x2xf32>
    %c0_3 = arith.constant 0 : index
    %c0_4 = arith.constant 0 : index
    %8 = vector.load %arg5[%c0_3, %c0_4] : memref<1x2xf32, #tpu.memory_space<vmem>>, vector<1x2xf32>
    %cst = arith.constant 3.906250e-03 : f32
    %c0_i32 = arith.constant 0 : i32
    %9 = arith.index_cast %c0_i32 : i32 to index
    %c0_5 = arith.constant 0 : index
    %c0_6 = arith.constant 0 : index
    %10 = vector.load %arg1[%9, %c0_5, %c0_6] : memref<1x32x256xf32, #tpu.memory_space<vmem>>, vector<1x32x256xf32>
    %11 = vector.shape_cast %10 : vector<1x32x256xf32> to vector<32x256xf32>
    %cst_7 = arith.constant dense<0.000000e+00> : vector<256xf32>
    %12 = vector.multi_reduction <add>, %11, %cst_7 [0] : vector<32x256xf32> to vector<256xf32>
    %13 = vector.shape_cast %12 : vector<256xf32> to vector<1x256xf32>
    %cst_8 = arith.constant 3.200000e+01 : f32
    %14 = vector.broadcast %cst_8 : f32 to vector<1x256xf32>
    %15 = arith.divf %13, %14 : vector<1x256xf32>
    %16 = vector.broadcast %15 : vector<1x256xf32> to vector<32x256xf32>
    %17 = arith.subf %11, %16 : vector<32x256xf32>
    %18 = arith.mulf %17, %17 : vector<32x256xf32>
    %cst_9 = arith.constant dense<0.000000e+00> : vector<256xf32>
    %19 = vector.multi_reduction <add>, %18, %cst_9 [0] : vector<32x256xf32> to vector<256xf32>
    %20 = vector.shape_cast %19 : vector<256xf32> to vector<1x256xf32>
    %cst_10 = arith.constant 3.200000e+01 : f32
    %21 = vector.broadcast %cst_10 : f32 to vector<1x256xf32>
    %22 = arith.divf %20, %21 : vector<1x256xf32>
    %cst_11 = arith.constant 9.99999974E-6 : f32
    %23 = vector.broadcast %cst_11 : f32 to vector<1x256xf32>
    %24 = arith.addf %22, %23 : vector<1x256xf32>
    %25 = math.rsqrt %24 : vector<1x256xf32>
    %26 = vector.broadcast %25 : vector<1x256xf32> to vector<32x256xf32>
    %27 = arith.mulf %17, %26 : vector<32x256xf32>
    %28 = vector.broadcast %1 : vector<32x1xf32> to vector<32x256xf32>
    %29 = arith.mulf %27, %28 : vector<32x256xf32>
    %30 = vector.broadcast %2 : vector<32x1xf32> to vector<32x256xf32>
    %31 = arith.addf %29, %30 : vector<32x256xf32>
    %cst_12 = arith.constant 0.000000e+00 : f32
    %32 = vector.broadcast %cst_12 : f32 to vector<32x256xf32>
    %c17_i32 = arith.constant 17 : i32
    %33 = tpu.dynamic_rotate %31 by %c17_i32 dim 1 : vector<32x256xf32>, i32 -> vector<32x256xf32>
    %c0_13 = arith.constant 0 : index
    %c0_14 = arith.constant 0 : index
    %c0_15 = arith.constant 0 : index
    %34 = vector.load %arg2[%c0_13, %c0_14, %c0_15] : memref<9x32x256xf32, #tpu.memory_space<vmem>>, vector<1x32x256xf32>
    %35 = vector.shape_cast %34 : vector<1x32x256xf32> to vector<32x256xf32>
    %36 = arith.mulf %33, %35 : vector<32x256xf32>
    %37 = arith.addf %32, %36 : vector<32x256xf32>
    %c16_i32 = arith.constant 16 : i32
    %38 = tpu.dynamic_rotate %31 by %c16_i32 dim 1 : vector<32x256xf32>, i32 -> vector<32x256xf32>
    %c1 = arith.constant 1 : index
    %c0_16 = arith.constant 0 : index
    %c0_17 = arith.constant 0 : index
    %39 = vector.load %arg2[%c1, %c0_16, %c0_17] : memref<9x32x256xf32, #tpu.memory_space<vmem>>, vector<1x32x256xf32>
    %40 = vector.shape_cast %39 : vector<1x32x256xf32> to vector<32x256xf32>
    %41 = arith.mulf %38, %40 : vector<32x256xf32>
    %42 = arith.addf %37, %41 : vector<32x256xf32>
    %c15_i32 = arith.constant 15 : i32
    %43 = tpu.dynamic_rotate %31 by %c15_i32 dim 1 : vector<32x256xf32>, i32 -> vector<32x256xf32>
    %c2 = arith.constant 2 : index
    %c0_18 = arith.constant 0 : index
    %c0_19 = arith.constant 0 : index
    %44 = vector.load %arg2[%c2, %c0_18, %c0_19] : memref<9x32x256xf32, #tpu.memory_space<vmem>>, vector<1x32x256xf32>
    %45 = vector.shape_cast %44 : vector<1x32x256xf32> to vector<32x256xf32>
    %46 = arith.mulf %43, %45 : vector<32x256xf32>
    %47 = arith.addf %42, %46 : vector<32x256xf32>
    %c1_i32 = arith.constant 1 : i32
    %48 = tpu.dynamic_rotate %31 by %c1_i32 dim 1 : vector<32x256xf32>, i32 -> vector<32x256xf32>
    %c3 = arith.constant 3 : index
    %c0_20 = arith.constant 0 : index
    %c0_21 = arith.constant 0 : index
    %49 = vector.load %arg2[%c3, %c0_20, %c0_21] : memref<9x32x256xf32, #tpu.memory_space<vmem>>, vector<1x32x256xf32>
    %50 = vector.shape_cast %49 : vector<1x32x256xf32> to vector<32x256xf32>
    %51 = arith.mulf %48, %50 : vector<32x256xf32>
    %52 = arith.addf %47, %51 : vector<32x256xf32>
    %c4 = arith.constant 4 : index
    %c0_22 = arith.constant 0 : index
    %c0_23 = arith.constant 0 : index
    %53 = vector.load %arg2[%c4, %c0_22, %c0_23] : memref<9x32x256xf32, #tpu.memory_space<vmem>>, vector<1x32x256xf32>
    %54 = vector.shape_cast %53 : vector<1x32x256xf32> to vector<32x256xf32>
    %55 = arith.mulf %31, %54 : vector<32x256xf32>
    %56 = arith.addf %52, %55 : vector<32x256xf32>
    %c255_i32 = arith.constant 255 : i32
    %57 = tpu.dynamic_rotate %31 by %c255_i32 dim 1 : vector<32x256xf32>, i32 -> vector<32x256xf32>
    %c5 = arith.constant 5 : index
    %c0_24 = arith.constant 0 : index
    %c0_25 = arith.constant 0 : index
    %58 = vector.load %arg2[%c5, %c0_24, %c0_25] : memref<9x32x256xf32, #tpu.memory_space<vmem>>, vector<1x32x256xf32>
    %59 = vector.shape_cast %58 : vector<1x32x256xf32> to vector<32x256xf32>
    %60 = arith.mulf %57, %59 : vector<32x256xf32>
    %61 = arith.addf %56, %60 : vector<32x256xf32>
    %c241_i32 = arith.constant 241 : i32
    %62 = tpu.dynamic_rotate %31 by %c241_i32 dim 1 : vector<32x256xf32>, i32 -> vector<32x256xf32>
    %c6 = arith.constant 6 : index
    %c0_26 = arith.constant 0 : index
    %c0_27 = arith.constant 0 : index
    %63 = vector.load %arg2[%c6, %c0_26, %c0_27] : memref<9x32x256xf32, #tpu.memory_space<vmem>>, vector<1x32x256xf32>
    %64 = vector.shape_cast %63 : vector<1x32x256xf32> to vector<32x256xf32>
    %65 = arith.mulf %62, %64 : vector<32x256xf32>
    %66 = arith.addf %61, %65 : vector<32x256xf32>
    %c240_i32 = arith.constant 240 : i32
    %67 = tpu.dynamic_rotate %31 by %c240_i32 dim 1 : vector<32x256xf32>, i32 -> vector<32x256xf32>
    %c7 = arith.constant 7 : index
    %c0_28 = arith.constant 0 : index
    %c0_29 = arith.constant 0 : index
    %68 = vector.load %arg2[%c7, %c0_28, %c0_29] : memref<9x32x256xf32, #tpu.memory_space<vmem>>, vector<1x32x256xf32>
    %69 = vector.shape_cast %68 : vector<1x32x256xf32> to vector<32x256xf32>
    %70 = arith.mulf %67, %69 : vector<32x256xf32>
    %71 = arith.addf %66, %70 : vector<32x256xf32>
    %c239_i32 = arith.constant 239 : i32
    %72 = tpu.dynamic_rotate %31 by %c239_i32 dim 1 : vector<32x256xf32>, i32 -> vector<32x256xf32>
    %c8 = arith.constant 8 : index
    %c0_30 = arith.constant 0 : index
    %c0_31 = arith.constant 0 : index
    %73 = vector.load %arg2[%c8, %c0_30, %c0_31] : memref<9x32x256xf32, #tpu.memory_space<vmem>>, vector<1x32x256xf32>
    %74 = vector.shape_cast %73 : vector<1x32x256xf32> to vector<32x256xf32>
    %75 = arith.mulf %72, %74 : vector<32x256xf32>
    %76 = arith.addf %71, %75 : vector<32x256xf32>
    %77 = vector.broadcast %3 : vector<32x1xf32> to vector<32x256xf32>
    %78 = arith.addf %76, %77 : vector<32x256xf32>
    %cst_32 = arith.constant dense<0.000000e+00> : vector<32xf32>
    %79 = vector.multi_reduction <add>, %31, %cst_32 [1] : vector<32x256xf32> to vector<32xf32>
    %80 = vector.shape_cast %79 : vector<32xf32> to vector<32x1xf32>
    %81 = vector.broadcast %cst : f32 to vector<32x1xf32>
    %82 = arith.mulf %80, %81 : vector<32x1xf32>
    %83 = vector.broadcast %82 : vector<32x1xf32> to vector<32x2xf32>
    %84 = arith.mulf %6, %83 : vector<32x2xf32>
    %cst_33 = arith.constant dense<0.000000e+00> : vector<2xf32>
    %85 = vector.multi_reduction <add>, %84, %cst_33 [0] : vector<32x2xf32> to vector<2xf32>
    %86 = vector.shape_cast %85 : vector<2xf32> to vector<1x2xf32>
    %87 = arith.addf %86, %8 : vector<1x2xf32>
    %cst_34 = arith.constant 0.000000e+00 : f32
    %88 = vector.broadcast %cst_34 : f32 to vector<1x2xf32>
    %89 = arith.maximumf %87, %88 : vector<1x2xf32>
    %90 = vector.broadcast %89 : vector<1x2xf32> to vector<32x2xf32>
    %91 = arith.mulf %7, %90 : vector<32x2xf32>
    %cst_35 = arith.constant dense<0.000000e+00> : vector<32xf32>
    %92 = vector.multi_reduction <add>, %91, %cst_35 [1] : vector<32x2xf32> to vector<32xf32>
    %93 = vector.shape_cast %92 : vector<32xf32> to vector<32x1xf32>
    %94 = arith.addf %93, %4 : vector<32x1xf32>
    %95 = arith.negf %94 : vector<32x1xf32>
    %96 = math.exp %95 : vector<32x1xf32>
    %cst_36 = arith.constant 1.000000e+00 : f32
    %97 = vector.broadcast %cst_36 : f32 to vector<32x1xf32>
    %98 = arith.addf %97, %96 : vector<32x1xf32>
    %99 = arith.divf %97, %98 : vector<32x1xf32>
    %100 = vector.broadcast %99 : vector<32x1xf32> to vector<32x256xf32>
    %101 = arith.mulf %31, %100 : vector<32x256xf32>
    %102 = arith.index_cast %c0_i32 : i32 to index
    %c0_37 = arith.constant 0 : index
    %c0_38 = arith.constant 0 : index
    %103 = vector.load %arg1[%102, %c0_37, %c0_38] : memref<1x32x256xf32, #tpu.memory_space<vmem>>, vector<1x32x256xf32>
    %104 = vector.shape_cast %103 : vector<1x32x256xf32> to vector<32x256xf32>
    %105 = arith.mulf %78, %101 : vector<32x256xf32>
    %106 = arith.addf %104, %105 : vector<32x256xf32>
    %107 = arith.index_cast %c0_i32 : i32 to index
    %c0_39 = arith.constant 0 : index
    %c0_40 = arith.constant 0 : index
    %108 = vector.load %arg6[%107, %c0_39, %c0_40] : memref<1x32x256xf32, #tpu.memory_space<vmem>>, vector<1x32x256xf32>
    %109 = vector.shape_cast %108 : vector<1x32x256xf32> to vector<32x256xf32>
    %110 = vector.shape_cast %106 : vector<32x256xf32> to vector<1x32x256xf32>
    tpu.vector_store %arg6[%107, %c0_39, %c0_40], %110 {strides = array<i32>} : memref<1x32x256xf32, #tpu.memory_space<vmem>>, vector<1x32x256xf32>,
    %c1_i32_41 = arith.constant 1 : i32
    return
  }
  func.func @transform_0(%arg0: i32) -> (i32, i32, i32) {
    %c0_i32 = arith.constant 0 : i32
    %c0_i32_0 = arith.constant 0 : i32
    %c0_i32_1 = arith.constant 0 : i32
    return %arg0, %c0_i32, %c0_i32_0 : i32, i32, i32
  }
  func.func @transform_1(%arg0: i32) -> (i32, i32, i32) {
    %c0_i32 = arith.constant 0 : i32
    %c0_i32_0 = arith.constant 0 : i32
    %c0_i32_1 = arith.constant 0 : i32
    %c0_i32_2 = arith.constant 0 : i32
    return %c0_i32, %c0_i32_0, %c0_i32_1 : i32, i32, i32
  }
  func.func @transform_2(%arg0: i32) -> (i32, i32) {
    %c0_i32 = arith.constant 0 : i32
    %c0_i32_0 = arith.constant 0 : i32
    %c0_i32_1 = arith.constant 0 : i32
    return %c0_i32, %c0_i32_0 : i32, i32
  }
  func.func @transform_3(%arg0: i32) -> (i32, i32) {
    %c0_i32 = arith.constant 0 : i32
    %c0_i32_0 = arith.constant 0 : i32
    %c0_i32_1 = arith.constant 0 : i32
    return %c0_i32, %c0_i32_0 : i32, i32
  }
  func.func @transform_4(%arg0: i32) -> (i32, i32) {
    %c0_i32 = arith.constant 0 : i32
    %c0_i32_0 = arith.constant 0 : i32
    %c0_i32_1 = arith.constant 0 : i32
    return %c0_i32, %c0_i32_0 : i32, i32
  }
  func.func @transform_5(%arg0: i32) -> (i32, i32, i32) {
    %c0_i32 = arith.constant 0 : i32
    %c0_i32_0 = arith.constant 0 : i32
    %c0_i32_1 = arith.constant 0 : i32
    return %arg0, %c0_i32, %c0_i32_0 : i32, i32, i32
  }
}

</mosaic_0001>

<llo_original>
// kernel: msef_forward.1
$region0: #{msef_forward.1}
  #allocation0 [shape = 'u32[]', space=smem, size = 0x4, offset = 0x4, fixed_abs, tag = 'smem constant byte address 0x4 - core index']
  #allocation1 [shape = 'u32[72,128]{1,0:T(1,128)}', space=vmem, size = 0x9000, scoped, tag = 'internal scratch']
  %s0 = inlined_call_operand.vmem [shape: f32[2,32,256], index: 0, kind: input, shape index: {}]
  %s1 = inlined_call_operand.vmem [shape: f32[9,32,256], index: 1, kind: input, shape index: {}]
  %s2 = inlined_call_operand.vmem [shape: f32[32,4], index: 2, kind: input, shape index: {}]
  %s3 = inlined_call_operand.vmem [shape: f32[32,4], index: 3, kind: input, shape index: {}]
  %s4 = inlined_call_operand.vmem [shape: f32[1,2], index: 4, kind: input, shape index: {}]
  %s5 = inlined_call_operand.vmem [shape: f32[2,32,256], index: 5, kind: output, shape index: {}]
  %s6 = sld [smem:[#allocation0]]
  $region53: #{msef_forward.1} parent=0
    _
  %s8 = ssub.s32 1, %s6
  %s9 = scalar_select 0, %s8, %s6
  loop: start=0, step=1, limit=4
  $region2: #{msef_forward.1} parent=0 // loop_pre_header
    _
  $region3: #{msef_forward.1} parent=0 // loop_header
    %s11 = sphi 0, %s15
    %p12 = scmp.ge.s32.totalorder %s11, 4
    %s21 = sphi 0, %s23
    %s24 = sphi 0, %s21
    %s25 = sphi 0, %s24
    %s41 = sphi 0, %s25
    %s45 = sphi 0, %s45
    %s47 = sphi 0, %s45
    %s48 = sphi 0, %s47
    %s62 = sphi 0, %s48
    %s66 = sphi 0, %s66
    %s68 = sphi 0, %s66
    %s69 = sphi 0, %s68
    %s83 = sphi 0, %s69
    %s87 = sphi 0, %s87
    %s89 = sphi 0, %s87
    %s90 = sphi 0, %s89
    %s104 = sphi 0, %s90
    %s108 = sphi 0, %s108
    %s110 = sphi 0, %s108
    %s111 = sphi 0, %s110
    %s125 = sphi 0, %s111
    %s131 = sphi 0, %s133
    %s134 = sphi 0, %s131
    %s135 = sphi 0, %s134
    %s151 = sphi 0, %s135
  $region4: #{msef_forward.1} parent=0 // loop_header_branch
    %14 = sbr.rel (%p12) target = $region8
  $region5: #{msef_forward.1} parent=0 // loop_body
    %s16 = ssub.s32 %s11, 1
    %s17 = ssub.s32 %s11, 2
    %s18 = sadd.s32 %s11, 1
    %s19 = ssub.s32 %s11, %s18
    %p20 = scmp.eq.s32.totalorder %s19, 0
    %s22 = sadd.s32 %s21, 1
    %s23 = scalar_select %p20, %s21, %s22
    %p26 = pneg %p20
    %p27 = scmp.eq.s32.totalorder %s11, 1
    %p28 = por %p26, %p27
    %p29 = scmp.ne.s32.totalorder %s21, %s24
    %p30 = scmp.eq.s32.totalorder %s11, 0
    %p31 = por %p29, %p30
    %p32 = scmp.ne.s32.totalorder %s21, %s24
    %p33 = scmp.eq.s32.totalorder %s16, 1
    %p34 = por %p32, %p33
    %p35 = scmp.ne.s32.totalorder %s24, %s25
    %p36 = scmp.eq.s32.totalorder %s16, 0
    %p37 = por %p35, %p36
    %p38 = scmp.ne.s32.totalorder %s24, %s25
    %p39 = scmp.eq.s32.totalorder %s17, 1
    %p40 = por %p38, %p39
    %p42 = scmp.ne.s32.totalorder %s25, %s41
    %p43 = scmp.eq.s32.totalorder %s17, 0
    %p44 = por %p42, %p43
    %s46 = sadd.s32 %s45, 1
    %p49 = scmp.eq.s32.totalorder %s11, 1
    %p50 = scmp.ne.s32.totalorder %s45, %s47
    %p51 = scmp.eq.s32.totalorder %s11, 0
    %p52 = por %p50, %p51
    %p53 = scmp.ne.s32.totalorder %s45, %s47
    %p54 = scmp.eq.s32.totalorder %s16, 1
    %p55 = por %p53, %p54
    %p56 = scmp.ne.s32.totalorder %s47, %s48
    %p57 = scmp.eq.s32.totalorder %s16, 0
    %p58 = por %p56, %p57
    %p59 = scmp.ne.s32.totalorder %s47, %s48
    %p60 = scmp.eq.s32.totalorder %s17, 1
    %p61 = por %p59, %p60
    %p63 = scmp.ne.s32.totalorder %s48, %s62
    %p64 = scmp.eq.s32.totalorder %s17, 0
    %p65 = por %p63, %p64
    %s67 = sadd.s32 %s66, 1
    %p70 = scmp.eq.s32.totalorder %s11, 1
    %p71 = scmp.ne.s32.totalorder %s66, %s68
    %p72 = scmp.eq.s32.totalorder %s11, 0
    %p73 = por %p71, %p72
    %p74 = scmp.ne.s32.totalorder %s66, %s68
    %p75 = scmp.eq.s32.totalorder %s16, 1
    %p76 = por %p74, %p75
    %p77 = scmp.ne.s32.totalorder %s68, %s69
    %p78 = scmp.eq.s32.totalorder %s16, 0
    %p79 = por %p77, %p78
    %p80 = scmp.ne.s32.totalorder %s68, %s69
    %p81 = scmp.eq.s32.totalorder %s17, 1
    %p82 = por %p80, %p81
    %p84 = scmp.ne.s32.totalorder %s69, %s83
    %p85 = scmp.eq.s32.totalorder %s17, 0
    %p86 = por %p84, %p85
    %s88 = sadd.s32 %s87, 1
    %p91 = scmp.eq.s32.totalorder %s11, 1
    %p92 = scmp.ne.s32.totalorder %s87, %s89
    %p93 = scmp.eq.s32.totalorder %s11, 0
    %p94 = por %p92, %p93
    %p95 = scmp.ne.s32.totalorder %s87, %s89
    %p96 = scmp.eq.s32.totalorder %s16, 1
    %p97 = por %p95, %p96
    %p98 = scmp.ne.s32.totalorder %s89, %s90
    %p99 = scmp.eq.s32.totalorder %s16, 0
    %p100 = por %p98, %p99
    %p101 = scmp.ne.s32.totalorder %s89, %s90
    %p102 = scmp.eq.s32.totalorder %s17, 1
    %p103 = por %p101, %p102
    %p105 = scmp.ne.s32.totalorder %s90, %s104
    %p106 = scmp.eq.s32.totalorder %s17, 0
    %p107 = por %p105, %p106
    %s109 = sadd.s32 %s108, 1
    %p112 = scmp.eq.s32.totalorder %s11, 1
    %p113 = scmp.ne.s32.totalorder %s108, %s110
    %p114 = scmp.eq.s32.totalorder %s11, 0
    %p115 = por %p113, %p114
    %p116 = scmp.ne.s32.totalorder %s108, %s110
    %p117 = scmp.eq.s32.totalorder %s16, 1
    %p118 = por %p116, %p117
    %p119 = scmp.ne.s32.totalorder %s110, %s111
    %p120 = scmp.eq.s32.totalorder %s16, 0
    %p121 = por %p119, %p120
    %p122 = scmp.ne.s32.totalorder %s110, %s111
    %p123 = scmp.eq.s32.totalorder %s17, 1
    %p124 = por %p122, %p123
    %p126 = scmp.ne.s32.totalorder %s111, %s125
    %p127 = scmp.eq.s32.totalorder %s17, 0
    %p128 = por %p126, %p127
    %s129 = ssub.s32 %s11, %s18
    %p130 = scmp.eq.s32.totalorder %s129, 0
    %s132 = sadd.s32 %s131, 1
    %s133 = scalar_select %p130, %s131, %s132
    %p136 = pneg %p130
    %p137 = scmp.eq.s32.totalorder %s11, 1
    %p138 = por %p136, %p137
    %p139 = scmp.ne.s32.totalorder %s131, %s134
    %p140 = scmp.eq.s32.totalorder %s11, 0
    %p141 = por %p139, %p140
    %p142 = scmp.ne.s32.totalorder %s131, %s134
    %p143 = scmp.eq.s32.totalorder %s16, 1
    %p144 = por %p142, %p143
    %p145 = scmp.ne.s32.totalorder %s134, %s135
    %p146 = scmp.eq.s32.totalorder %s16, 0
    %p147 = por %p145, %p146
    %p148 = scmp.ne.s32.totalorder %s134, %s135
    %p149 = scmp.eq.s32.totalorder %s17, 1
    %p150 = por %p148, %p149
    %p152 = scmp.ne.s32.totalorder %s135, %s151
    %p153 = scmp.eq.s32.totalorder %s17, 0
    %p154 = por %p152, %p153
    %p155 = scmp.le.s32.totalorder 1, %s11
    %p156 = scmp.lt.s32.totalorder %s11, 3
    %p157 = pnand %p155, %p156
    %p158 = pneg %p157
    // Predicated region
    $region9: #{msef_forward.1} parent=5 // pred_check
      _
    $region10: #{msef_forward.1} parent=5 // pred_check_branch
      %160 = sbr.rel (%p157) target = $region12
    $region11: #{msef_forward.1} parent=5 // pred_region
      %s161 = ssub.s32 %s11, 1
      // Predicated region
      $region13: #{msef_forward.1} parent=11 // pred_check
        %p162 = pneg %p58
      $region14: #{msef_forward.1} parent=11 // pred_check_branch
        %164 = sbr.rel (%p162) target = $region16
      $region15: #{msef_forward.1} parent=11 // pred_region
        _
      $region16: #{msef_forward.1} parent=11 // pred_fallthru
        _
      // Predicated region
      $region17: #{msef_forward.1} parent=11 // pred_check
        %p165 = pneg %p79
      $region18: #{msef_forward.1} parent=11 // pred_check_branch
        %167 = sbr.rel (%p165) target = $region20
      $region19: #{msef_forward.1} parent=11 // pred_region
        _
      $region20: #{msef_forward.1} parent=11 // pred_fallthru
        _
      // Predicated region
      $region21: #{msef_forward.1} parent=11 // pred_check
        %p168 = pneg %p100
      $region22: #{msef_forward.1} parent=11 // pred_check_branch
        %170 = sbr.rel (%p168) target = $region24
      $region23: #{msef_forward.1} parent=11 // pred_region
        _
      $region24: #{msef_forward.1} parent=11 // pred_fallthru
        _
      // Predicated region
      $region25: #{msef_forward.1} parent=11 // pred_check
        %p171 = pneg %p121
      $region26: #{msef_forward.1} parent=11 // pred_check_branch
        %173 = sbr.rel (%p171) target = $region28
      $region27: #{msef_forward.1} parent=11 // pred_region
        _
      $region28: #{msef_forward.1} parent=11 // pred_fallthru
        _
    $region12: #{msef_forward.1} parent=5 // pred_fallthru
      _
    %p174 = scmp.lt.s32.totalorder %s11, 2
    // Predicated region
    $region29: #{msef_forward.1} parent=5 // pred_check
      %p175 = pneg %p174
    $region30: #{msef_forward.1} parent=5 // pred_check_branch
      %177 = sbr.rel (%p175) target = $region32
    $region31: #{msef_forward.1} parent=5 // pred_region
      // Predicated region
      $region33: #{msef_forward.1} parent=31 // pred_check
        %p178 = pneg %p31
      $region34: #{msef_forward.1} parent=31 // pred_check_branch
        %180 = sbr.rel (%p178) target = $region36
      $region35: #{msef_forward.1} parent=31 // pred_region
        %p181 = scmp.lt.s32.totalorder %s11, 1
        %s182 = scalar_select %p181, %s11, 1
        %s183 = smul.addr %s182, 8
        %s184 = smul.addr %s183, 8
        %s185 = scalar_lea.vmem %s0, %s184
      $region36: #{msef_forward.1} parent=31 // pred_fallthru
        _
    $region32: #{msef_forward.1} parent=5 // pred_fallthru
      _
    %p186 = scmp.le.s32.totalorder 1, %s11
    %p187 = scmp.lt.s32.totalorder %s11, 3
    %p188 = pnand %p186, %p187
    %p189 = pneg %p188
    // Predicated region
    $region37: #{msef_forward.1} parent=5 // pred_check
      _
    $region38: #{msef_forward.1} parent=5 // pred_check_branch
      %191 = sbr.rel (%p188) target = $region40
    $region39: #{msef_forward.1} parent=5 // pred_region
      %s192 = ssub.s32 %s11, 1
      %p193 = scmp.lt.s32.totalorder %s16, 1
      %s194 = scalar_select %p193, %s16, 1
      %s195 = smul.addr %s194, 8
      %s196 = smul.addr %s195, 8
      %s197 = scalar_lea.vmem %s0, %s196
      %p198 = pneg %p37
      %p199 = pneg %p34
      %p200 = pneg %p58
      %p201 = pneg %p55
      %p202 = pneg %p79
      %p203 = pneg %p76
      %p204 = pneg %p100
      %p205 = pneg %p97
      %p206 = pneg %p121
      %p207 = pneg %p118
      %p208 = pneg %p147
      %p209 = pneg %p144
      %p210 = scmp.lt.s32.totalorder %s16, 1
      %s211 = scalar_select %p210, %s16, 1
      %s212 = smul.addr %s211, 8
      %s213 = smul.addr %s212, 8
      %s214 = scalar_lea.vmem %s5, %s213
      %p215 = scmp.lt.s32.totalorder %s16, 1
      %s216 = scalar_select %p215, %s16, 1
      %s217 = smul.addr %s216, 8
      %s218 = smul.addr %s217, 8
      %s219 = scalar_lea.vmem %s0, %s218
      %p220 = scmp.lt.s32.totalorder %s16, 1
      %s221 = scalar_select %p220, %s16, 1
      %s222 = smul.addr %s221, 8
      %s223 = smul.addr %s222, 8
      %s224 = scalar_lea.vmem %s5, %s223
      %v225 = vld [vmem:[%s2] sm:$0xff]
      %v226 = vld [vmem:[%s2 + $0x8] sm:$0xff]
      %v227 = vld [vmem:[%s2 + $0x10] sm:$0xff]
      %v228 = vld [vmem:[%s2 + $0x18] sm:$0xff]
      %v229 = vld [vmem:[%s3] sm:$0xff]
      %v230 = vld [vmem:[%s3 + $0x8] sm:$0xff]
      %v231 = vld [vmem:[%s3 + $0x10] sm:$0xff]
      %v232 = vld [vmem:[%s3 + $0x18] sm:$0xff]
      %v233 = vld [vmem:[%s4] sm:$0x1]
      %v234 = vld [vmem:[%s219] sm:$0xff]
      %v235 = vld [vmem:[%s219 + $0x8] sm:$0xff]
      %v236 = vld [vmem:[%s219 + $0x10] sm:$0xff]
      %v237 = vld [vmem:[%s219 + $0x18] sm:$0xff]
      %v238 = vld [vmem:[%s219 + $0x20] sm:$0xff]
      %v239 = vld [vmem:[%s219 + $0x28] sm:$0xff]
      %v240 = vld [vmem:[%s219 + $0x30] sm:$0xff]
      %v241 = vld [vmem:[%s219 + $0x38] sm:$0xff]
      %v242 = vadd.f32 %v234, %v236
      %v243 = vadd.f32 %v242, %v238
      %v244 = vadd.f32 %v243, %v240
      %v245 = vrot.slane %v244, 4
      %v246 = vadd.f32 %v244, %v245
      %v247 = vrot.slane %v246, 2
      %v248 = vadd.f32 %v246, %v247
      %v249 = vrot.slane %v248, 1
      %v250 = vadd.f32 %v248, %v249
      %v251 = vadd.f32 %v235, %v237
      %v252 = vadd.f32 %v251, %v239
      %v253 = vadd.f32 %v252, %v241
      %v254 = vrot.slane %v253, 4
      %v255 = vadd.f32 %v253, %v254
      %v256 = vrot.slane %v255, 2
      %v257 = vadd.f32 %v255, %v256
      %v258 = vrot.slane %v257, 1
      %v259 = vadd.f32 %v257, %v258
      %v260 = vrcp.pop 32.0
      %v261 = vmul.f32 32.0, %v260
      %v262 = vsub.f32 1.0, %v261
      %v263 = vmul.f32 %v260, %v262
      %v264 = vadd.f32 %v260, %v263
      %vm265 = vweird.f32 %v260
      %v266 = vsel %vm265, %v260, %v264
      %v267 = vmul.f32 %v250, %v266
      %v268 = vmul.f32 %v259, %v266
      %v269 = vsub.f32 %v234, %v267
      %v270 = vsub.f32 %v235, %v268
      %v271 = vsub.f32 %v236, %v267
      %v272 = vsub.f32 %v237, %v268
      %v273 = vsub.f32 %v238, %v267
      %v274 = vsub.f32 %v239, %v268
      %v275 = vsub.f32 %v240, %v267
      %v276 = vsub.f32 %v241, %v268
      %v277 = vmul.f32 %v269, %v269
      %v278 = vmul.f32 %v270, %v270
      %v279 = vmul.f32 %v271, %v271
      %v280 = vmul.f32 %v272, %v272
      %v281 = vmul.f32 %v273, %v273
      %v282 = vmul.f32 %v274, %v274
      %v283 = vmul.f32 %v275, %v275
      %v284 = vmul.f32 %v276, %v276
      %v285 = vadd.f32 %v277, %v279
      %v286 = vadd.f32 %v285, %v281
      %v287 = vadd.f32 %v286, %v283
      %v288 = vrot.slane %v287, 4
      %v289 = vadd.f32 %v287, %v288
      %v290 = vrot.slane %v289, 2
      %v291 = vadd.f32 %v289, %v290
      %v292 = vrot.slane %v291, 1
      %v293 = vadd.f32 %v291, %v292
      %v294 = vadd.f32 %v278, %v280
      %v295 = vadd.f32 %v294, %v282
      %v296 = vadd.f32 %v295, %v284
      %v297 = vrot.slane %v296, 4
      %v298 = vadd.f32 %v296, %v297
      %v299 = vrot.slane %v298, 2
      %v300 = vadd.f32 %v298, %v299
      %v301 = vrot.slane %v300, 1
      %v302 = vadd.f32 %v300, %v301
      %v303 = vmul.f32 %v293, %v266
      %v304 = vmul.f32 %v302, %v266
      %v305 = vadd.f32 %v303, 1e-05
      %v306 = vadd.f32 %v304, 1e-05
      %v307 = vrsqrt.pop %v305
      %v308 = vmul.f32 %v307, %v305
      %v309 = vmul.f32 %v308, %v307
      %v310 = vmul.f32 0.5, %v309
      %v311 = vsub.f32 1.5, %v310
      %v312 = vmul.f32 %v307, %v311
      %vm313 = vweird.f32 %v305
      %vm314 = vweird.f32 %v307
      %vm315 = vmor %vm313, %vm314
      %v316 = vsel %vm315, %v307, %v312
      %v317 = vrsqrt.pop %v306
      %v318 = vmul.f32 %v317, %v306
      %v319 = vmul.f32 %v318, %v317
      %v320 = vmul.f32 0.5, %v319
      %v321 = vsub.f32 1.5, %v320
      %v322 = vmul.f32 %v317, %v321
      %vm323 = vweird.f32 %v306
      %vm324 = vweird.f32 %v317
      %vm325 = vmor %vm323, %vm324
      %v326 = vsel %vm325, %v317, %v322
      %v327 = vmul.f32 %v269, %v316
      %v328 = vmul.f32 %v270, %v326
      %v329 = vmul.f32 %v271, %v316
      %v330 = vmul.f32 %v272, %v326
      %v331 = vmul.f32 %v273, %v316
      %v332 = vmul.f32 %v274, %v326
      %v333 = vmul.f32 %v275, %v316
      %v334 = vmul.f32 %v276, %v326
      %336 = vset.pattern.permute.xlu0 0
      %337 = vperm.xlu0 %336, %v225
      %v338 = vpop.permute.xlu0 %337
      %341 = vset.pattern.permute.xlu0 0
      %342 = vperm.xlu0 %341, %v226
      %v343 = vpop.permute.xlu0 %342
      %346 = vset.pattern.permute.xlu0 0
      %347 = vperm.xlu0 %346, %v227
      %v348 = vpop.permute.xlu0 %347
      %351 = vset.pattern.permute.xlu0 0
      %352 = vperm.xlu0 %351, %v228
      %v353 = vpop.permute.xlu0 %352
      %v355 = vmul.f32 %v327, %v338
      %v356 = vmul.f32 %v328, %v338
      %v357 = vmul.f32 %v329, %v343
      %v358 = vmul.f32 %v330, %v343
      %v359 = vmul.f32 %v331, %v348
      %v360 = vmul.f32 %v332, %v348
      %v361 = vmul.f32 %v333, %v353
      %v362 = vmul.f32 %v334, %v353
      %363 = vset.pattern.permute.xlu0 1
      %364 = vperm.xlu0 %363, %v225
      %v365 = vpop.permute.xlu0 %364
      %367 = vset.pattern.permute.xlu0 1
      %368 = vperm.xlu0 %367, %v226
      %v369 = vpop.permute.xlu0 %368
      %371 = vset.pattern.permute.xlu0 1
      %372 = vperm.xlu0 %371, %v227
      %v373 = vpop.permute.xlu0 %372
      %375 = vset.pattern.permute.xlu0 1
      %376 = vperm.xlu0 %375, %v228
      %v377 = vpop.permute.xlu0 %376
      %v379 = vadd.f32 %v355, %v365
      %v380 = vadd.f32 %v356, %v365
      %v381 = vadd.f32 %v357, %v369
      %v382 = vadd.f32 %v358, %v369
      %v383 = vadd.f32 %v359, %v373
      %v384 = vadd.f32 %v360, %v373
      %v385 = vadd.f32 %v361, %v377
      %v386 = vadd.f32 %v362, %v377
      %387 = vrot.lane.b32.xlu0 %v379, 17
      %v388 = vpop.permute.xlu0 %387
      %389 = vrot.lane.b32.xlu0 %v381, 17
      %v390 = vpop.permute.xlu0 %389
      %391 = vrot.lane.b32.xlu0 %v383, 17
      %v392 = vpop.permute.xlu0 %391
      %393 = vrot.lane.b32.xlu0 %v385, 17
      %v394 = vpop.permute.xlu0 %393
      %395 = vrot.lane.b32.xlu0 %v380, 17
      %v396 = vpop.permute.xlu0 %395
      %397 = vrot.lane.b32.xlu0 %v382, 17
      %v398 = vpop.permute.xlu0 %397
      %399 = vrot.lane.b32.xlu0 %v384, 17
      %v400 = vpop.permute.xlu0 %399
      %401 = vrot.lane.b32.xlu0 %v386, 17
      %v402 = vpop.permute.xlu0 %401
      %v403 = vlaneseq
      %v404 = vand.u32 %v403, 127
      %vm405 = vcmp.lt.s32.totalorder %v404, 17
      %v406 = vsel %vm405, %v388, %v396
      %v407 = vsel %vm405, %v390, %v398
      %v408 = vsel %vm405, %v392, %v400
      %v409 = vsel %vm405, %v394, %v402
      %v410 = vsel %vm405, %v396, %v388
      %v411 = vsel %vm405, %v398, %v390
      %v412 = vsel %vm405, %v400, %v392
      %v413 = vsel %vm405, %v402, %v394
      %v414 = vld [vmem:[%s1] sm:$0xff]
      %v415 = vld [vmem:[%s1 + $0x8] sm:$0xff]
      %v416 = vld [vmem:[%s1 + $0x10] sm:$0xff]
      %v417 = vld [vmem:[%s1 + $0x18] sm:$0xff]
      %v418 = vld [vmem:[%s1 + $0x20] sm:$0xff]
      %v419 = vld [vmem:[%s1 + $0x28] sm:$0xff]
      %v420 = vld [vmem:[%s1 + $0x30] sm:$0xff]
      %v421 = vld [vmem:[%s1 + $0x38] sm:$0xff]
      %v422 = vmul.f32 %v410, %v414
      %v423 = vmul.f32 %v406, %v415
      %v424 = vmul.f32 %v411, %v416
      %v425 = vmul.f32 %v407, %v417
      %v426 = vmul.f32 %v412, %v418
      %v427 = vmul.f32 %v408, %v419
      %v428 = vmul.f32 %v413, %v420
      %v429 = vmul.f32 %v409, %v421
      %v430 = vadd.f32 %v422, 0.0
      %v431 = vadd.f32 %v423, 0.0
      %v432 = vadd.f32 %v424, 0.0
      %v433 = vadd.f32 %v425, 0.0
      %v434 = vadd.f32 %v426, 0.0
      %v435 = vadd.f32 %v427, 0.0
      %v436 = vadd.f32 %v428, 0.0
      %v437 = vadd.f32 %v429, 0.0
      %438 = vrot.lane.b32.xlu0 %v379, 16
      %v439 = vpop.permute.xlu0 %438
      %440 = vrot.lane.b32.xlu0 %v381, 16
      %v441 = vpop.permute.xlu0 %440
      %442 = vrot.lane.b32.xlu0 %v383, 16
      %v443 = vpop.permute.xlu0 %442
      %444 = vrot.lane.b32.xlu0 %v385, 16
      %v445 = vpop.permute.xlu0 %444
      %446 = vrot.lane.b32.xlu0 %v380, 16
      %v447 = vpop.permute.xlu0 %446
      %448 = vrot.lane.b32.xlu0 %v382, 16
      %v449 = vpop.permute.xlu0 %448
      %450 = vrot.lane.b32.xlu0 %v384, 16
      %v451 = vpop.permute.xlu0 %450
      %452 = vrot.lane.b32.xlu0 %v386, 16
      %v453 = vpop.permute.xlu0 %452
      %vm454 = vcmp.lt.s32.totalorder %v404, 16
      %v455 = vsel %vm454, %v439, %v447
      %v456 = vsel %vm454, %v441, %v449
      %v457 = vsel %vm454, %v443, %v451
      %v458 = vsel %vm454, %v445, %v453
      %v459 = vsel %vm454, %v447, %v439
      %v460 = vsel %vm454, %v449, %v441
      %v461 = vsel %vm454, %v451, %v443
      %v462 = vsel %vm454, %v453, %v445
      %s463 = scalar_lea.vmem %s1, 64
      %v464 = vld [vmem:[%s463] sm:$0xff]
      %v465 = vld [vmem:[%s463 + $0x8] sm:$0xff]
      %v466 = vld [vmem:[%s463 + $0x10] sm:$0xff]
      %v467 = vld [vmem:[%s463 + $0x18] sm:$0xff]
      %v468 = vld [vmem:[%s463 + $0x20] sm:$0xff]
      %v469 = vld [vmem:[%s463 + $0x28] sm:$0xff]
      %v470 = vld [vmem:[%s463 + $0x30] sm:$0xff]
      %v471 = vld [vmem:[%s463 + $0x38] sm:$0xff]
      %v472 = vmul.f32 %v459, %v464
      %v473 = vmul.f32 %v455, %v465
      %v474 = vmul.f32 %v460, %v466
      %v475 = vmul.f32 %v456, %v467
      %v476 = vmul.f32 %v461, %v468
      %v477 = vmul.f32 %v457, %v469
      %v478 = vmul.f32 %v462, %v470
      %v479 = vmul.f32 %v458, %v471
      %v480 = vadd.f32 %v430, %v472
      %v481 = vadd.f32 %v431, %v473
      %v482 = vadd.f32 %v432, %v474
      %v483 = vadd.f32 %v433, %v475
      %v484 = vadd.f32 %v434, %v476
      %v485 = vadd.f32 %v435, %v477
      %v486 = vadd.f32 %v436, %v478
      %v487 = vadd.f32 %v437, %v479
      %488 = vrot.lane.b32.xlu0 %v379, 15
      %v489 = vpop.permute.xlu0 %488
      %490 = vrot.lane.b32.xlu0 %v381, 15
      %v491 = vpop.permute.xlu0 %490
      %492 = vrot.lane.b32.xlu0 %v383, 15
      %v493 = vpop.permute.xlu0 %492
      %494 = vrot.lane.b32.xlu0 %v385, 15
      %v495 = vpop.permute.xlu0 %494
      %496 = vrot.lane.b32.xlu0 %v380, 15
      %v497 = vpop.permute.xlu0 %496
      %498 = vrot.lane.b32.xlu0 %v382, 15
      %v499 = vpop.permute.xlu0 %498
      %500 = vrot.lane.b32.xlu0 %v384, 15
      %v501 = vpop.permute.xlu0 %500
      %502 = vrot.lane.b32.xlu0 %v386, 15
      %v503 = vpop.permute.xlu0 %502
      %vm504 = vcmp.lt.s32.totalorder %v404, 15
      %v505 = vsel %vm504, %v489, %v497
      %v506 = vsel %vm504, %v491, %v499
      %v507 = vsel %vm504, %v493, %v501
      %v508 = vsel %vm504, %v495, %v503
      %v509 = vsel %vm504, %v497, %v489
      %v510 = vsel %vm504, %v499, %v491
      %v511 = vsel %vm504, %v501, %v493
      %v512 = vsel %vm504, %v503, %v495
      %s513 = scalar_lea.vmem %s1, 128
      %v514 = vld [vmem:[%s513] sm:$0xff]
      %v515 = vld [vmem:[%s513 + $0x8] sm:$0xff]
      %v516 = vld [vmem:[%s513 + $0x10] sm:$0xff]
      %v517 = vld [vmem:[%s513 + $0x18] sm:$0xff]
      %v518 = vld [vmem:[%s513 + $0x20] sm:$0xff]
      %v519 = vld [vmem:[%s513 + $0x28] sm:$0xff]
      %v520 = vld [vmem:[%s513 + $0x30] sm:$0xff]
      %v521 = vld [vmem:[%s513 + $0x38] sm:$0xff]
      %v522 = vmul.f32 %v509, %v514
      %v523 = vmul.f32 %v505, %v515
      %v524 = vmul.f32 %v510, %v516
      %v525 = vmul.f32 %v506, %v517
      %v526 = vmul.f32 %v511, %v518
      %v527 = vmul.f32 %v507, %v519
      %v528 = vmul.f32 %v512, %v520
      %v529 = vmul.f32 %v508, %v521
      %v530 = vadd.f32 %v480, %v522
      %v531 = vadd.f32 %v481, %v523
      %v532 = vadd.f32 %v482, %v524
      %v533 = vadd.f32 %v483, %v525
      %v534 = vadd.f32 %v484, %v526
      %v535 = vadd.f32 %v485, %v527
      %v536 = vadd.f32 %v486, %v528
      %v537 = vadd.f32 %v487, %v529
      %538 = vrot.lane.b32.xlu0 %v379, 1
      %v539 = vpop.permute.xlu0 %538
      %540 = vrot.lane.b32.xlu0 %v381, 1
      %v541 = vpop.permute.xlu0 %540
      %542 = vrot.lane.b32.xlu0 %v383, 1
      %v543 = vpop.permute.xlu0 %542
      %544 = vrot.lane.b32.xlu0 %v385, 1
      %v545 = vpop.permute.xlu0 %544
      %546 = vrot.lane.b32.xlu0 %v380, 1
      %v547 = vpop.permute.xlu0 %546
      %548 = vrot.lane.b32.xlu0 %v382, 1
      %v549 = vpop.permute.xlu0 %548
      %550 = vrot.lane.b32.xlu0 %v384, 1
      %v551 = vpop.permute.xlu0 %550
      %552 = vrot.lane.b32.xlu0 %v386, 1
      %v553 = vpop.permute.xlu0 %552
      %vm554 = vcmp.lt.s32.totalorder %v404, 1
      %v555 = vsel %vm554, %v539, %v547
      %v556 = vsel %vm554, %v541, %v549
      %v557 = vsel %vm554, %v543, %v551
      %v558 = vsel %vm554, %v545, %v553
      %v559 = vsel %vm554, %v547, %v539
      %v560 = vsel %vm554, %v549, %v541
      %v561 = vsel %vm554, %v551, %v543
      %v562 = vsel %vm554, %v553, %v545
      %s563 = scalar_lea.vmem %s1, 192
      %v564 = vld [vmem:[%s563] sm:$0xff]
      %v565 = vld [vmem:[%s563 + $0x8] sm:$0xff]
      %v566 = vld [vmem:[%s563 + $0x10] sm:$0xff]
      %v567 = vld [vmem:[%s563 + $0x18] sm:$0xff]
      %v568 = vld [vmem:[%s563 + $0x20] sm:$0xff]
      %v569 = vld [vmem:[%s563 + $0x28] sm:$0xff]
      %v570 = vld [vmem:[%s563 + $0x30] sm:$0xff]
      %v571 = vld [vmem:[%s563 + $0x38] sm:$0xff]
      %v572 = vmul.f32 %v559, %v564
      %v573 = vmul.f32 %v555, %v565
      %v574 = vmul.f32 %v560, %v566
      %v575 = vmul.f32 %v556, %v567
      %v576 = vmul.f32 %v561, %v568
      %v577 = vmul.f32 %v557, %v569
      %v578 = vmul.f32 %v562, %v570
      %v579 = vmul.f32 %v558, %v571
      %v580 = vadd.f32 %v530, %v572
      %v581 = vadd.f32 %v531, %v573
      %v582 = vadd.f32 %v532, %v574
      %v583 = vadd.f32 %v533, %v575
      %v584 = vadd.f32 %v534, %v576
      %v585 = vadd.f32 %v535, %v577
      %v586 = vadd.f32 %v536, %v578
      %v587 = vadd.f32 %v537, %v579
      %s588 = scalar_lea.vmem %s1, 256
      %v589 = vld [vmem:[%s588] sm:$0xff]
      %v590 = vld [vmem:[%s588 + $0x8] sm:$0xff]
      %v591 = vld [vmem:[%s588 + $0x10] sm:$0xff]
      %v592 = vld [vmem:[%s588 + $0x18] sm:$0xff]
      %v593 = vld [vmem:[%s588 + $0x20] sm:$0xff]
      %v594 = vld [vmem:[%s588 + $0x28] sm:$0xff]
      %v595 = vld [vmem:[%s588 + $0x30] sm:$0xff]
      %v596 = vld [vmem:[%s588 + $0x38] sm:$0xff]
      %v597 = vmul.f32 %v379, %v589
      %v598 = vmul.f32 %v380, %v590
      %v599 = vmul.f32 %v381, %v591
      %v600 = vmul.f32 %v382, %v592
      %v601 = vmul.f32 %v383, %v593
      %v602 = vmul.f32 %v384, %v594
      %v603 = vmul.f32 %v385, %v595
      %v604 = vmul.f32 %v386, %v596
      %v605 = vadd.f32 %v580, %v597
      %v606 = vadd.f32 %v581, %v598
      %v607 = vadd.f32 %v582, %v599
      %v608 = vadd.f32 %v583, %v600
      %v609 = vadd.f32 %v584, %v601
      %v610 = vadd.f32 %v585, %v602
      %v611 = vadd.f32 %v586, %v603
      %v612 = vadd.f32 %v587, %v604
      %613 = vrot.lane.b32.xlu0 %v379, 127
      %v614 = vpop.permute.xlu0 %613
      %615 = vrot.lane.b32.xlu0 %v381, 127
      %v616 = vpop.permute.xlu0 %615
      %617 = vrot.lane.b32.xlu0 %v383, 127
      %v618 = vpop.permute.xlu0 %617
      %619 = vrot.lane.b32.xlu0 %v385, 127
      %v620 = vpop.permute.xlu0 %619
      %621 = vrot.lane.b32.xlu0 %v380, 127
      %v622 = vpop.permute.xlu0 %621
      %623 = vrot.lane.b32.xlu0 %v382, 127
      %v624 = vpop.permute.xlu0 %623
      %625 = vrot.lane.b32.xlu0 %v384, 127
      %v626 = vpop.permute.xlu0 %625
      %627 = vrot.lane.b32.xlu0 %v386, 127
      %v628 = vpop.permute.xlu0 %627
      %vm629 = vcmp.lt.s32.totalorder %v404, 127
      %v630 = vsel %vm629, %v614, %v622
      %v631 = vsel %vm629, %v616, %v624
      %v632 = vsel %vm629, %v618, %v626
      %v633 = vsel %vm629, %v620, %v628
      %v634 = vsel %vm629, %v622, %v614
      %v635 = vsel %vm629, %v624, %v616
      %v636 = vsel %vm629, %v626, %v618
      %v637 = vsel %vm629, %v628, %v620
      %s638 = scalar_lea.vmem %s1, 320
      %v639 = vld [vmem:[%s638] sm:$0xff]
      %v640 = vld [vmem:[%s638 + $0x8] sm:$0xff]
      %v641 = vld [vmem:[%s638 + $0x10] sm:$0xff]
      %v642 = vld [vmem:[%s638 + $0x18] sm:$0xff]
      %v643 = vld [vmem:[%s638 + $0x20] sm:$0xff]
      %v644 = vld [vmem:[%s638 + $0x28] sm:$0xff]
      %v645 = vld [vmem:[%s638 + $0x30] sm:$0xff]
      %v646 = vld [vmem:[%s638 + $0x38] sm:$0xff]
      %v647 = vmul.f32 %v630, %v639
      %v648 = vmul.f32 %v634, %v640
      %v649 = vmul.f32 %v631, %v641
      %v650 = vmul.f32 %v635, %v642
      %v651 = vmul.f32 %v632, %v643
      %v652 = vmul.f32 %v636, %v644
      %v653 = vmul.f32 %v633, %v645
      %v654 = vmul.f32 %v637, %v646
      %v655 = vadd.f32 %v605, %v647
      %v656 = vadd.f32 %v606, %v648
      %v657 = vadd.f32 %v607, %v649
      %v658 = vadd.f32 %v608, %v650
      %v659 = vadd.f32 %v609, %v651
      %v660 = vadd.f32 %v610, %v652
      %v661 = vadd.f32 %v611, %v653
      %v662 = vadd.f32 %v612, %v654
      %663 = vrot.lane.b32.xlu0 %v379, 113
      %v664 = vpop.permute.xlu0 %663
      %665 = vrot.lane.b32.xlu0 %v381, 113
      %v666 = vpop.permute.xlu0 %665
      %667 = vrot.lane.b32.xlu0 %v383, 113
      %v668 = vpop.permute.xlu0 %667
      %669 = vrot.lane.b32.xlu0 %v385, 113
      %v670 = vpop.permute.xlu0 %669
      %671 = vrot.lane.b32.xlu0 %v380, 113
      %v672 = vpop.permute.xlu0 %671
      %673 = vrot.lane.b32.xlu0 %v382, 113
      %v674 = vpop.permute.xlu0 %673
      %675 = vrot.lane.b32.xlu0 %v384, 113
      %v676 = vpop.permute.xlu0 %675
      %677 = vrot.lane.b32.xlu0 %v386, 113
      %v678 = vpop.permute.xlu0 %677
      %vm679 = vcmp.lt.s32.totalorder %v404, 113
      %v680 = vsel %vm679, %v664, %v672
      %v681 = vsel %vm679, %v666, %v674
      %v682 = vsel %vm679, %v668, %v676
      %v683 = vsel %vm679, %v670, %v678
      %v684 = vsel %vm679, %v672, %v664
      %v685 = vsel %vm679, %v674, %v666
      %v686 = vsel %vm679, %v676, %v668
      %v687 = vsel %vm679, %v678, %v670
      %s688 = scalar_lea.vmem %s1, 384
      %v689 = vld [vmem:[%s688] sm:$0xff]
      %v690 = vld [vmem:[%s688 + $0x8] sm:$0xff]
      %v691 = vld [vmem:[%s688 + $0x10] sm:$0xff]
      %v692 = vld [vmem:[%s688 + $0x18] sm:$0xff]
      %v693 = vld [vmem:[%s688 + $0x20] sm:$0xff]
      %v694 = vld [vmem:[%s688 + $0x28] sm:$0xff]
      %v695 = vld [vmem:[%s688 + $0x30] sm:$0xff]
      %v696 = vld [vmem:[%s688 + $0x38] sm:$0xff]
      %v697 = vmul.f32 %v680, %v689
      %v698 = vmul.f32 %v684, %v690
      %v699 = vmul.f32 %v681, %v691
      %v700 = vmul.f32 %v685, %v692
      %v701 = vmul.f32 %v682, %v693
      %v702 = vmul.f32 %v686, %v694
      %v703 = vmul.f32 %v683, %v695
      %v704 = vmul.f32 %v687, %v696
      %v705 = vadd.f32 %v655, %v697
      %v706 = vadd.f32 %v656, %v698
      %v707 = vadd.f32 %v657, %v699
      %v708 = vadd.f32 %v658, %v700
      %v709 = vadd.f32 %v659, %v701
      %v710 = vadd.f32 %v660, %v702
      %v711 = vadd.f32 %v661, %v703
      %v712 = vadd.f32 %v662, %v704
      %713 = vrot.lane.b32.xlu0 %v379, 112
      %v714 = vpop.permute.xlu0 %713
      %715 = vrot.lane.b32.xlu0 %v381, 112
      %v716 = vpop.permute.xlu0 %715
      %717 = vrot.lane.b32.xlu0 %v383, 112
      %v718 = vpop.permute.xlu0 %717
      %719 = vrot.lane.b32.xlu0 %v385, 112
      %v720 = vpop.permute.xlu0 %719
      %721 = vrot.lane.b32.xlu0 %v380, 112
      %v722 = vpop.permute.xlu0 %721
      %723 = vrot.lane.b32.xlu0 %v382, 112
      %v724 = vpop.permute.xlu0 %723
      %725 = vrot.lane.b32.xlu0 %v384, 112
      %v726 = vpop.permute.xlu0 %725
      %727 = vrot.lane.b32.xlu0 %v386, 112
      %v728 = vpop.permute.xlu0 %727
      %vm729 = vcmp.lt.s32.totalorder %v404, 112
      %v730 = vsel %vm729, %v714, %v722
      %v731 = vsel %vm729, %v716, %v724
      %v732 = vsel %vm729, %v718, %v726
      %v733 = vsel %vm729, %v720, %v728
      %v734 = vsel %vm729, %v722, %v714
      %v735 = vsel %vm729, %v724, %v716
      %v736 = vsel %vm729, %v726, %v718
      %v737 = vsel %vm729, %v728, %v720
      %s738 = scalar_lea.vmem %s1, 448
      %v739 = vld [vmem:[%s738] sm:$0xff]
      %v740 = vld [vmem:[%s738 + $0x8] sm:$0xff]
      %v741 = vld [vmem:[%s738 + $0x10] sm:$0xff]
      %v742 = vld [vmem:[%s738 + $0x18] sm:$0xff]
      %v743 = vld [vmem:[%s738 + $0x20] sm:$0xff]
      %v744 = vld [vmem:[%s738 + $0x28] sm:$0xff]
      %v745 = vld [vmem:[%s738 + $0x30] sm:$0xff]
      %v746 = vld [vmem:[%s738 + $0x38] sm:$0xff]
      %v747 = vmul.f32 %v730, %v739
      %v748 = vmul.f32 %v734, %v740
      %v749 = vmul.f32 %v731, %v741
      %v750 = vmul.f32 %v735, %v742
      %v751 = vmul.f32 %v732, %v743
      %v752 = vmul.f32 %v736, %v744
      %v753 = vmul.f32 %v733, %v745
      %v754 = vmul.f32 %v737, %v746
      %v755 = vadd.f32 %v705, %v747
      %v756 = vadd.f32 %v706, %v748
      %v757 = vadd.f32 %v707, %v749
      %v758 = vadd.f32 %v708, %v750
      %v759 = vadd.f32 %v709, %v751
      %v760 = vadd.f32 %v710, %v752
      %v761 = vadd.f32 %v711, %v753
      %v762 = vadd.f32 %v712, %v754
      %763 = vrot.lane.b32.xlu0 %v379, 111
      %v764 = vpop.permute.xlu0 %763
      %765 = vrot.lane.b32.xlu0 %v381, 111
      %v766 = vpop.permute.xlu0 %765
      %767 = vrot.lane.b32.xlu0 %v383, 111
      %v768 = vpop.permute.xlu0 %767
      %769 = vrot.lane.b32.xlu0 %v385, 111
      %v770 = vpop.permute.xlu0 %769
      %771 = vrot.lane.b32.xlu0 %v380, 111
      %v772 = vpop.permute.xlu0 %771
      %773 = vrot.lane.b32.xlu0 %v382, 111
      %v774 = vpop.permute.xlu0 %773
      %775 = vrot.lane.b32.xlu0 %v384, 111
      %v776 = vpop.permute.xlu0 %775
      %777 = vrot.lane.b32.xlu0 %v386, 111
      %v778 = vpop.permute.xlu0 %777
      %vm779 = vcmp.lt.s32.totalorder %v404, 111
      %v780 = vsel %vm779, %v764, %v772
      %v781 = vsel %vm779, %v766, %v774
      %v782 = vsel %vm779, %v768, %v776
      %v783 = vsel %vm779, %v770, %v778
      %v784 = vsel %vm779, %v772, %v764
      %v785 = vsel %vm779, %v774, %v766
      %v786 = vsel %vm779, %v776, %v768
      %v787 = vsel %vm779, %v778, %v770
      %s788 = scalar_lea.vmem %s1, 512
      %v789 = vld [vmem:[%s788] sm:$0xff]
      %v790 = vld [vmem:[%s788 + $0x8] sm:$0xff]
      %v791 = vld [vmem:[%s788 + $0x10] sm:$0xff]
      %v792 = vld [vmem:[%s788 + $0x18] sm:$0xff]
      %v793 = vld [vmem:[%s788 + $0x20] sm:$0xff]
      %v794 = vld [vmem:[%s788 + $0x28] sm:$0xff]
      %v795 = vld [vmem:[%s788 + $0x30] sm:$0xff]
      %v796 = vld [vmem:[%s788 + $0x38] sm:$0xff]
      %v797 = vmul.f32 %v780, %v789
      %v798 = vmul.f32 %v784, %v790
      %v799 = vmul.f32 %v781, %v791
      %v800 = vmul.f32 %v785, %v792
      %v801 = vmul.f32 %v782, %v793
      %v802 = vmul.f32 %v786, %v794
      %v803 = vmul.f32 %v783, %v795
      %v804 = vmul.f32 %v787, %v796
      %v805 = vadd.f32 %v755, %v797
      %v806 = vadd.f32 %v756, %v798
      %v807 = vadd.f32 %v757, %v799
      %v808 = vadd.f32 %v758, %v800
      %v809 = vadd.f32 %v759, %v801
      %v810 = vadd.f32 %v760, %v802
      %v811 = vadd.f32 %v761, %v803
      %v812 = vadd.f32 %v762, %v804
      %813 = vset.pattern.permute.xlu0 2
      %814 = vperm.xlu0 %813, %v225
      %v815 = vpop.permute.xlu0 %814
      %817 = vset.pattern.permute.xlu0 2
      %818 = vperm.xlu0 %817, %v226
      %v819 = vpop.permute.xlu0 %818
      %821 = vset.pattern.permute.xlu0 2
      %822 = vperm.xlu0 %821, %v227
      %v823 = vpop.permute.xlu0 %822
      %825 = vset.pattern.permute.xlu0 2
      %826 = vperm.xlu0 %825, %v228
      %v827 = vpop.permute.xlu0 %826
      %v829 = vadd.f32 %v805, %v815
      %v830 = vadd.f32 %v806, %v815
      %v831 = vadd.f32 %v807, %v819
      %v832 = vadd.f32 %v808, %v819
      %v833 = vadd.f32 %v809, %v823
      %v834 = vadd.f32 %v810, %v823
      %v835 = vadd.f32 %v811, %v827
      %v836 = vadd.f32 %v812, %v827
      %v837 = vadd.f32 %v379, %v380
      %838 = vadd.xlane.f32.xlu0 %v837
      %v839 = vpop.xlane.xlu0 %838
      %v840 = vadd.f32 %v381, %v382
      %841 = vadd.xlane.f32.xlu0 %v840
      %v842 = vpop.xlane.xlu0 %841
      %v843 = vadd.f32 %v383, %v384
      %844 = vadd.xlane.f32.xlu0 %v843
      %v845 = vpop.xlane.xlu0 %844
      %v846 = vadd.f32 %v385, %v386
      %847 = vadd.xlane.f32.xlu0 %v846
      %v848 = vpop.xlane.xlu0 %847
      %v849 = vmul.f32 %v839, 0.00390625
      %v850 = vmul.f32 %v842, 0.00390625
      %v851 = vmul.f32 %v845, 0.00390625
      %v852 = vmul.f32 %v848, 0.00390625
      %v853 = vmul.f32 %v229, %v849
      %v854 = vmul.f32 %v230, %v850
      %v855 = vmul.f32 %v231, %v851
      %v856 = vmul.f32 %v232, %v852
      %vm857 = vcmask 15360
      %v858 = vsel %vm857, %v853, 0.0
      %v859 = vsel %vm857, %v854, 0.0
      %v860 = vadd.f32 %v858, %v859
      %v861 = vsel %vm857, %v855, 0.0
      %v862 = vadd.f32 %v860, %v861
      %v863 = vsel %vm857, %v856, 0.0
      %v864 = vadd.f32 %v862, %v863
      %v865 = vrot.slane %v864, 4
      %v866 = vadd.f32 %v864, %v865
      %v867 = vrot.slane %v866, 2
      %v868 = vadd.f32 %v866, %v867
      %v869 = vrot.slane %v868, 1
      %v870 = vadd.f32 %v868, %v869
      %v871 = vadd.f32 %v870, %v233
      %v872 = vmax.f32 %v871, 0.0
      %v873 = vperm.slane %v872, 0
      %875 = vrot.lane.b32.xlu0 %v873, 2
      %v876 = vpop.permute.xlu0 %875
      %v878 = vmul.f32 %v229, %v876
      %v879 = vmul.f32 %v230, %v876
      %v880 = vmul.f32 %v231, %v876
      %v881 = vmul.f32 %v232, %v876
      %886 = vrot.lane.b32.xlu0 %v878, 126
      %v887 = vpop.permute.xlu0 %886
      %888 = vrot.lane.b32.xlu0 %v879, 126
      %v889 = vpop.permute.xlu0 %888
      %890 = vrot.lane.b32.xlu0 %v880, 126
      %v891 = vpop.permute.xlu0 %890
      %892 = vrot.lane.b32.xlu0 %v881, 126
      %v893 = vpop.permute.xlu0 %892
      %v898 = vsel %vm857, %v887, 0.0
      %899 = vadd.xlane.f32.xlu0 %v898
      %v900 = vpop.xlane.xlu0 %899
      %v901 = vsel %vm857, %v889, 0.0
      %902 = vadd.xlane.f32.xlu0 %v901
      %v903 = vpop.xlane.xlu0 %902
      %v904 = vsel %vm857, %v891, 0.0
      %905 = vadd.xlane.f32.xlu0 %v904
      %v906 = vpop.xlane.xlu0 %905
      %v907 = vsel %vm857, %v893, 0.0
      %908 = vadd.xlane.f32.xlu0 %v907
      %v909 = vpop.xlane.xlu0 %908
      %v910 = vadd.f32 %v900, %v225
      %v911 = vadd.f32 %v903, %v226
      %v912 = vadd.f32 %v906, %v227
      %v913 = vadd.f32 %v909, %v228
      %v914 = vxor.u32 %v910, 2147483648
      %v915 = vxor.u32 %v911, 2147483648
      %v916 = vxor.u32 %v912, 2147483648
      %v917 = vxor.u32 %v913, 2147483648
      %v918 = vmul.f32 %v914, 1.442695
      %v919 = vpow.pop %v918
      %v920 = vmul.f32 %v915, 1.442695
      %v921 = vpow.pop %v920
      %v922 = vmul.f32 %v916, 1.442695
      %v923 = vpow.pop %v922
      %v924 = vmul.f32 %v917, 1.442695
      %v925 = vpow.pop %v924
      %v926 = vadd.f32 %v919, 1.0
      %v927 = vadd.f32 %v921, 1.0
      %v928 = vadd.f32 %v923, 1.0
      %v929 = vadd.f32 %v925, 1.0
      %v930 = vrcp.pop %v926
      %v931 = vmul.f32 %v926, %v930
      %v932 = vsub.f32 1.0, %v931
      %v933 = vmul.f32 %v930, %v932
      %v934 = vadd.f32 %v930, %v933
      %vm935 = vweird.f32 %v926
      %vm936 = vweird.f32 %v930
      %vm937 = vmor %vm935, %vm936
      %v938 = vsel %vm937, %v930, %v934
      %v939 = vand.u32 2147483647, %v926
      %vm940 = vcmp.eq.f32.partialorder %v939, 8.507059e+37
      %v941 = vand.u32 %v926, 2147483648
      %v942 = vor.u32 1.1754944e-38, %v941
      %v943 = vsel %vm940, %v942, %v938
      %v944 = vmul.f32 1.0, %v943
      %v945 = vrcp.pop %v927
      %v946 = vmul.f32 %v927, %v945
      %v947 = vsub.f32 1.0, %v946
      %v948 = vmul.f32 %v945, %v947
      %v949 = vadd.f32 %v945, %v948
      %vm950 = vweird.f32 %v927
      %vm951 = vweird.f32 %v945
      %vm952 = vmor %vm950, %vm951
      %v953 = vsel %vm952, %v945, %v949
      %v954 = vand.u32 2147483647, %v927
      %vm955 = vcmp.eq.f32.partialorder %v954, 8.507059e+37
      %v956 = vand.u32 %v927, 2147483648
      %v957 = vor.u32 1.1754944e-38, %v956
      %v958 = vsel %vm955, %v957, %v953
      %v959 = vmul.f32 1.0, %v958
      %v960 = vrcp.pop %v928
      %v961 = vmul.f32 %v928, %v960
      %v962 = vsub.f32 1.0, %v961
      %v963 = vmul.f32 %v960, %v962
      %v964 = vadd.f32 %v960, %v963
      %vm965 = vweird.f32 %v928
      %vm966 = vweird.f32 %v960
      %vm967 = vmor %vm965, %vm966
      %v968 = vsel %vm967, %v960, %v964
      %v969 = vand.u32 2147483647, %v928
      %vm970 = vcmp.eq.f32.partialorder %v969, 8.507059e+37
      %v971 = vand.u32 %v928, 2147483648
      %v972 = vor.u32 1.1754944e-38, %v971
      %v973 = vsel %vm970, %v972, %v968
      %v974 = vmul.f32 1.0, %v973
      %v975 = vrcp.pop %v929
      %v976 = vmul.f32 %v929, %v975
      %v977 = vsub.f32 1.0, %v976
      %v978 = vmul.f32 %v975, %v977
      %v979 = vadd.f32 %v975, %v978
      %vm980 = vweird.f32 %v929
      %vm981 = vweird.f32 %v975
      %vm982 = vmor %vm980, %vm981
      %v983 = vsel %vm982, %v975, %v979
      %v984 = vand.u32 2147483647, %v929
      %vm985 = vcmp.eq.f32.partialorder %v984, 8.507059e+37
      %v986 = vand.u32 %v929, 2147483648
      %v987 = vor.u32 1.1754944e-38, %v986
      %v988 = vsel %vm985, %v987, %v983
      %v989 = vmul.f32 1.0, %v988
      %991 = vset.pattern.permute.xlu0 3
      %992 = vperm.xlu0 %991, %v944
      %v993 = vpop.permute.xlu0 %992
      %996 = vset.pattern.permute.xlu0 3
      %997 = vperm.xlu0 %996, %v959
      %v998 = vpop.permute.xlu0 %997
      %1001 = vset.pattern.permute.xlu0 3
      %1002 = vperm.xlu0 %1001, %v974
      %v1003 = vpop.permute.xlu0 %1002
      %1006 = vset.pattern.permute.xlu0 3
      %1007 = vperm.xlu0 %1006, %v989
      %v1008 = vpop.permute.xlu0 %1007
      %v1010 = vmul.f32 %v379, %v993
      %v1011 = vmul.f32 %v380, %v993
      %v1012 = vmul.f32 %v381, %v998
      %v1013 = vmul.f32 %v382, %v998
      %v1014 = vmul.f32 %v383, %v1003
      %v1015 = vmul.f32 %v384, %v1003
      %v1016 = vmul.f32 %v385, %v1008
      %v1017 = vmul.f32 %v386, %v1008
      %v1018 = vmul.f32 %v829, %v1010
      %v1019 = vmul.f32 %v830, %v1011
      %v1020 = vmul.f32 %v831, %v1012
      %v1021 = vmul.f32 %v832, %v1013
      %v1022 = vmul.f32 %v833, %v1014
      %v1023 = vmul.f32 %v834, %v1015
      %v1024 = vmul.f32 %v835, %v1016
      %v1025 = vmul.f32 %v836, %v1017
      %v1026 = vadd.f32 %v234, %v1018
      %v1027 = vadd.f32 %v235, %v1019
      %v1028 = vadd.f32 %v236, %v1020
      %v1029 = vadd.f32 %v237, %v1021
      %v1030 = vadd.f32 %v238, %v1022
      %v1031 = vadd.f32 %v239, %v1023
      %v1032 = vadd.f32 %v240, %v1024
      %v1033 = vadd.f32 %v241, %v1025
      %1034 = vst [vmem:[%s224] sm:$0xff] %v1026
      %1035 = vst [vmem:[%s224 + $0x8] sm:$0xff] %v1027
      %1036 = vst [vmem:[%s224 + $0x10] sm:$0xff] %v1028
      %1037 = vst [vmem:[%s224 + $0x18] sm:$0xff] %v1029
      %1038 = vst [vmem:[%s224 + $0x20] sm:$0xff] %v1030
      %1039 = vst [vmem:[%s224 + $0x28] sm:$0xff] %v1031
      %1040 = vst [vmem:[%s224 + $0x30] sm:$0xff] %v1032
      %1041 = vst [vmem:[%s224 + $0x38] sm:$0xff] %v1033
      %p1042 = scmp.lt.s32.totalorder %s16, 1
      %s1043 = scalar_select %p1042, %s16, 1
      %s1044 = smul.addr %s1043, 8
      %s1045 = smul.addr %s1044, 8
      %s1046 = scalar_lea.vmem %s5, %s1045
      // Predicated region
      $region41: #{msef_forward.1} parent=39 // pred_check
        %p1047 = pneg %p144
      $region42: #{msef_forward.1} parent=39 // pred_check_branch
        %1049 = sbr.rel (%p1047) target = $region44
      $region43: #{msef_forward.1} parent=39 // pred_region
        _
      $region44: #{msef_forward.1} parent=39 // pred_fallthru
        _
    $region40: #{msef_forward.1} parent=5 // pred_fallthru
      _
    %p1050 = scmp.le.s32.totalorder 2, %s11
    // Predicated region
    $region45: #{msef_forward.1} parent=5 // pred_check
      %p1051 = pneg %p1050
    $region46: #{msef_forward.1} parent=5 // pred_check_branch
      %1053 = sbr.rel (%p1051) target = $region48
    $region47: #{msef_forward.1} parent=5 // pred_region
      %s1054 = ssub.s32 %s11, 2
      // Predicated region
      $region49: #{msef_forward.1} parent=47 // pred_check
        %p1055 = pneg %p150
      $region50: #{msef_forward.1} parent=47 // pred_check_branch
        %1057 = sbr.rel (%p1055) target = $region52
      $region51: #{msef_forward.1} parent=47 // pred_region
        %p1058 = scmp.lt.s32.totalorder %s17, 1
        %s1059 = scalar_select %p1058, %s17, 1
        %s1060 = smul.addr %s1059, 8
        %s1061 = smul.addr %s1060, 8
        %s1062 = scalar_lea.vmem %s5, %s1061
      $region52: #{msef_forward.1} parent=47 // pred_fallthru
        _
    $region48: #{msef_forward.1} parent=5 // pred_fallthru
      _
  $region6: #{msef_forward.1} parent=0 // loop_footer
    %s15 = sadd.s32 1, %s11
  $region7: #{msef_forward.1} parent=0 // loop_footer_branch
    %10 = sbr.rel target = $region3
  $region8: #{msef_forward.1} parent=0 // loop_exit
    _

</llo_original>
